<compile_context>
chip_gen: v6e
topology: v6e:2x2x1
jax: 0.10.0
libtpu: 0.0.40
codegen_flags: <defaults>
</compile_context>

<pallas_src>
import functools

import jax
import jax.numpy as jnp
from jax import lax
from jax.experimental import pallas as pl
from jax.experimental.pallas import tpu as pltpu


def _round_up(x, m):
    return ((x + m - 1) // m) * m


def _self_gram(x):
    """x @ x.T, contracting the feature (lane) dim directly on the MXU."""
    return lax.dot_general(
        x, x, (((1,), (1,)), ((), ())), preferred_element_type=jnp.float32)


def _dist_from_gram(gram, sq_col, feat_dim):
    """dist[i,j] = (||x_i||^2 + ||x_j||^2 - 2 x_i.x_j) / feat_dim.

    sq_col is the exact f32 (N, 1) squared-norm vector; the (1, N) row copy is
    built with a diagonal mask + sublane reduce (no explicit transpose).
    """
    n = gram.shape[0]
    rows = lax.broadcasted_iota(jnp.int32, (n, n), 0)
    cols = lax.broadcasted_iota(jnp.int32, (n, n), 1)
    sq_b = jnp.broadcast_to(sq_col, (n, n))
    sq_diag = jnp.where(rows == cols, sq_b, jnp.float32(0.0))     # (N, N)
    sq_row = jnp.sum(sq_diag, axis=0, keepdims=True)              # (1, N)
    return (sq_col + sq_row - 2.0 * gram) * (1.0 / jnp.float32(feat_dim))


def _diversity_kernel(noises_ref, images_ref, out_ref, gram_acc, norm_acc,
                      *, d_true, z_dim, tk, needs_mask, matmul_dtype):
    k = pl.program_id(0)
    last = pl.num_programs(0) - 1

    @pl.when(k == 0)
    def _init():
        gram_acc[...] = jnp.zeros_like(gram_acc)
        norm_acc[...] = jnp.zeros_like(norm_acc)

    x = images_ref[...]
    if needs_mask:
        # Ragged last tile: out-of-range feature columns are undefined, so
        # select zeros (exact: zero features add nothing to Gram / norms).
        # The mask is all-true on every non-final step; VPU cost hides under
        # the DMA / MXU work.
        cols = lax.broadcasted_iota(jnp.int32, x.shape, 1) + k * tk
        x = jnp.where(cols < d_true, x, jnp.zeros_like(x))

    # Exact f32 squared norms accumulated in the streaming loop.
    xf = x.astype(jnp.float32)
    norm_acc[...] += jnp.sum(xf * xf, axis=1, keepdims=True)

    # Gram accumulation on the MXU (f32 accumulator).
    xm = x.astype(matmul_dtype)
    gram_acc[...] += _self_gram(xm)

    @pl.when(k == last)
    def _epilogue():
        n = gram_acc.shape[0]
        images_dist = _dist_from_gram(gram_acc[...], norm_acc[...], d_true)

        # Noises are tiny (N, Z): compute their distance once, here only.
        z = noises_ref[...].astype(jnp.float32)
        sq_z = jnp.sum(z * z, axis=1, keepdims=True)
        noises_dist = _dist_from_gram(_self_gram(z), sq_z, z_dim)

        prod = -images_dist * noises_dist                          # (N, N)
        s = jnp.sum(jnp.sum(prod, axis=1, keepdims=True),
                    axis=0, keepdims=True)                         # (1, 1)
        out_ref[...] = jnp.exp(s * (1.0 / jnp.float32(n * n)))


def diversity_loss(noises, images, *, tk=None, use_bf16_matmul=False):
    """noises: (N, Z) float; images: (N, C, H, W) or (N, D) float."""
    n = images.shape[0]
    if images.ndim > 2:
        images = images.reshape(n, -1)

    # Keep the streamed dtype narrow (bf16/f16 stay as-is: half the HBM
    # bytes); only non-standard dtypes get normalized to f32.
    if images.dtype not in (jnp.float32, jnp.bfloat16, jnp.float16):
        images = images.astype(jnp.float32)
    if noises.dtype not in (jnp.float32, jnp.bfloat16, jnp.float16):
        noises = noises.astype(jnp.float32)

    d_true = images.shape[1]
    z_dim = noises.shape[1]
    itemsize = jnp.dtype(images.dtype).itemsize

    # MXU input dtype: bf16 when requested or when the input is already bf16;
    # f32 otherwise (matches the PyTorch reference numerics).
    if use_bf16_matmul or images.dtype == jnp.bfloat16:
        matmul_dtype = jnp.bfloat16
    else:
        matmul_dtype = jnp.float32

    # --- Tile-size / VMEM budgeting ------------------------------------------
    d_aligned = _round_up(d_true, 128)
    n_sub = _round_up(n, 8)
    n_lane = _round_up(n, 128)
    if tk is None:
        # ~16 MiB budget for the double-buffered image stream, capped at 2048
        # (diminishing returns past 1-2K-wide tiles) and at the aligned D.
        stream_budget = 16 << 20
        tk = stream_budget // max(1, 2 * n_sub * itemsize)
        tk = min(tk, 2048)
    tk = min(int(tk), d_aligned)
    tk = max(128, (tk // 128) * 128)

    n_steps = (d_true + tk - 1) // tk
    needs_mask = (d_true % tk) != 0

    # Derive the scoped-VMEM limit from the actual footprint (double-buffered
    # image stream + resident noises + gram/norm scratch + epilogue N^2 temps).
    gram_bytes = n_sub * n_lane * 4
    stream_bytes = 2 * n_sub * tk * itemsize
    noise_bytes = 2 * n_sub * _round_up(z_dim, 128) * jnp.dtype(noises.dtype).itemsize
    norm_bytes = n_sub * 128 * 4
    epilogue_bytes = 6 * gram_bytes
    needed = stream_bytes + noise_bytes + gram_bytes + norm_bytes + epilogue_bytes
    vmem_limit = int(min(max(needed * 5 // 4 + (2 << 20), 32 << 20), 128 << 20))

    kernel = functools.partial(
        _diversity_kernel, d_true=d_true, z_dim=z_dim, tk=tk,
        needs_mask=needs_mask, matmul_dtype=matmul_dtype)

    out = pl.pallas_call(
        kernel,
        out_shape=jax.ShapeDtypeStruct((1, 1), jnp.float32),
        grid_spec=pltpu.PrefetchScalarGridSpec(
            num_scalar_prefetch=0,
            grid=(n_steps,),
            in_specs=[
                # noises: full block, same index every step -> stays resident.
                pl.BlockSpec((n, z_dim), lambda k: (0, 0)),
                # images: streamed over the feature dimension.
                pl.BlockSpec((n, tk), lambda k: (0, k)),
            ],
            # Same output block across the reduction axis -> written back once.
            out_specs=pl.BlockSpec((1, 1), lambda k: (0, 0)),
            scratch_shapes=[
                pltpu.VMEM((n, n), jnp.float32),   # Gram accumulator
                pltpu.VMEM((n, 1), jnp.float32),   # squared-norm accumulator
            ],
        ),
        compiler_params=pltpu.CompilerParams(
            dimension_semantics=("arbitrary",),
            vmem_limit_bytes=vmem_limit,
        ),
    )(noises, images)
    return out[0, 0]


def diversity_loss_ref(noises, images):
    """Pure-JAX reference mirroring the PyTorch code (sanity check)."""
    n = images.shape[0]
    if images.ndim > 2:
        images = images.reshape(n, -1)

    def pdist(t):
        diff = t[None, :, :] - t[:, None, :]
        return jnp.mean(diff * diff, axis=2)

    return jnp.exp(jnp.mean(-pdist(images) * pdist(noises)))


if __name__ == "__main__":
    key = jax.random.PRNGKey(0)
    k1, k2 = jax.random.split(key)

    batch, channels, spatial, hidden = 2, 4, 16, 32
    images = jax.random.normal(k1, (batch, channels, spatial, spatial), jnp.float32)
    noises = jax.random.normal(k2, (batch, hidden), jnp.float32)

    ref = diversity_loss_ref(noises, images)

    # Default path: D = 1024, auto TK = 1024 -> single grid step, no masking.
    out = diversity_loss(noises, images)
    jax.block_until_ready(out)
    assert jnp.allclose(out, ref, rtol=1e-5, atol=1e-5), (out, ref)

    # Ragged-tail path: TK = 384 -> 3 steps, last tile masked in-kernel
    # (exercises the no-pad streaming of a D that TK does not divide).
    out_ragged = diversity_loss(noises, images, tk=384)
    jax.block_until_ready(out_ragged)
    assert jnp.allclose(out_ragged, ref, rtol=1e-5, atol=1e-5), (out_ragged, ref)

    print("KERNEL_OK")
</pallas_src>

<mosaic_0001>
module attributes {stable_mosaic.version = 11 : i64} {
  func.func @_diversity_kernel(%arg0: i32, %arg1: memref<2x32xf32, #tpu.memory_space<vmem>>, %arg2: memref<2x1024xf32, #tpu.memory_space<vmem>>, %arg3: memref<1x1xf32, #tpu.memory_space<vmem>>, %arg4: memref<2x2xf32, #tpu.memory_space<vmem>>, %arg5: memref<2x1xf32, #tpu.memory_space<vmem>>) attributes {dimension_semantics = [#tpu.dimension_semantics<arbitrary>], iteration_bounds = array<i64: 1>, scalar_prefetch = 0 : i64, scratch_operands = 2 : i64, tpu.core_type = #tpu.core_type<tc>, window_params = [{pipeline_mode = #tpu.pipeline_mode<synchronous>, transform_indices = @transform_0, window_bounds = array<i64: 2, 32>}, {transform_indices = @transform_1, window_bounds = array<i64: 2, 1024>}, {pipeline_mode = #tpu.pipeline_mode<synchronous>, transform_indices = @transform_2, window_bounds = array<i64: 1, 1>}]} {
    %c0_i32 = arith.constant 0 : i32
    %0 = arith.cmpi eq, %arg0, %c0_i32 : i32
    %1 = arith.extui %0 : i1 to i32
    %c0_i32_0 = arith.constant 0 : i32
    %2 = arith.cmpi ne, %1, %c0_i32_0 : i32
    scf.if %2 {
      %cst_13 = arith.constant 0.000000e+00 : f32
      %17 = vector.broadcast %cst_13 : f32 to vector<2x2xf32>
      %c0_14 = arith.constant 0 : index
      %c0_15 = arith.constant 0 : index
      %18 = vector.load %arg4[%c0_14, %c0_15] : memref<2x2xf32, #tpu.memory_space<vmem>>, vector<2x2xf32>
      tpu.vector_store %arg4[%c0_14, %c0_15], %17 {strides = array<i32>} : memref<2x2xf32, #tpu.memory_space<vmem>>, vector<2x2xf32>,
      %cst_16 = arith.constant 0.000000e+00 : f32
      %19 = vector.broadcast %cst_16 : f32 to vector<2x1xf32>
      %c0_17 = arith.constant 0 : index
      %c0_18 = arith.constant 0 : index
      %20 = vector.load %arg5[%c0_17, %c0_18] : memref<2x1xf32, #tpu.memory_space<vmem>>, vector<2x1xf32>
      tpu.vector_store %arg5[%c0_17, %c0_18], %19 {strides = array<i32>} : memref<2x1xf32, #tpu.memory_space<vmem>>, vector<2x1xf32>,
    } else {
    }
    %c0 = arith.constant 0 : index
    %c0_1 = arith.constant 0 : index
    %3 = vector.load %arg2[%c0, %c0_1] : memref<2x1024xf32, #tpu.memory_space<vmem>>, vector<2x1024xf32>
    %c0_2 = arith.constant 0 : index
    %c0_3 = arith.constant 0 : index
    %4 = vector.load %arg5[%c0_2, %c0_3] : memref<2x1xf32, #tpu.memory_space<vmem>>, vector<2x1xf32>
    %5 = arith.mulf %3, %3 : vector<2x1024xf32>
    %cst = arith.constant dense<0.000000e+00> : vector<2xf32>
    %6 = vector.multi_reduction <add>, %5, %cst [1] : vector<2x1024xf32> to vector<2xf32>
    %7 = vector.shape_cast %6 : vector<2xf32> to vector<2x1xf32>
    %8 = arith.addf %4, %7 : vector<2x1xf32>
    %c0_4 = arith.constant 0 : index
    %c0_5 = arith.constant 0 : index
    %9 = vector.load %arg5[%c0_4, %c0_5] : memref<2x1xf32, #tpu.memory_space<vmem>>, vector<2x1xf32>
    tpu.vector_store %arg5[%c0_4, %c0_5], %8 {strides = array<i32>} : memref<2x1xf32, #tpu.memory_space<vmem>>, vector<2x1xf32>,
    %c0_6 = arith.constant 0 : index
    %c0_7 = arith.constant 0 : index
    %10 = vector.load %arg4[%c0_6, %c0_7] : memref<2x2xf32, #tpu.memory_space<vmem>>, vector<2x2xf32>
    %cst_8 = arith.constant dense<0.000000e+00> : vector<2x2xf32>
    %11 = tpu.matmul %3, %3, %cst_8 {dimension_numbers = #tpu.dot_dimension_numbers<[1], [1], [0], [0], [0, 0, 1, 0], [], []>} : vector<2x1024xf32>, vector<2x1024xf32>, vector<2x2xf32> -> vector<2x2xf32>
    %12 = arith.addf %10, %11 : vector<2x2xf32>
    %c0_9 = arith.constant 0 : index
    %c0_10 = arith.constant 0 : index
    %13 = vector.load %arg4[%c0_9, %c0_10] : memref<2x2xf32, #tpu.memory_space<vmem>>, vector<2x2xf32>
    tpu.vector_store %arg4[%c0_9, %c0_10], %12 {strides = array<i32>} : memref<2x2xf32, #tpu.memory_space<vmem>>, vector<2x2xf32>,
    %c0_i32_11 = arith.constant 0 : i32
    %14 = arith.cmpi eq, %arg0, %c0_i32_11 : i32
    %15 = arith.extui %14 : i1 to i32
    %c0_i32_12 = arith.constant 0 : i32
    %16 = arith.cmpi ne, %15, %c0_i32_12 : i32
    scf.if %16 {
      %c0_13 = arith.constant 0 : index
      %c0_14 = arith.constant 0 : index
      %17 = vector.load %arg4[%c0_13, %c0_14] : memref<2x2xf32, #tpu.memory_space<vmem>>, vector<2x2xf32>
      %c0_15 = arith.constant 0 : index
      %c0_16 = arith.constant 0 : index
      %18 = vector.load %arg5[%c0_15, %c0_16] : memref<2x1xf32, #tpu.memory_space<vmem>>, vector<2x1xf32>
      %19 = tpu.iota {dimensions = array<i32: 0>} : vector<2x2xi32>
      %20 = tpu.iota {dimensions = array<i32: 1>} : vector<2x2xi32>
      %21 = vector.shape_cast %18 : vector<2x1xf32> to vector<2x1xf32>
      %22 = vector.broadcast %21 : vector<2x1xf32> to vector<2x2xf32>
      %23 = arith.cmpi eq, %19, %20 : vector<2x2xi32>
      %cst_17 = arith.constant 0.000000e+00 : f32
      %24 = vector.broadcast %cst_17 : f32 to vector<2x2xf32>
      %25 = arith.select %23, %22, %24 : vector<2x2xi1>, vector<2x2xf32>
      %cst_18 = arith.constant dense<0.000000e+00> : vector<2xf32>
      %26 = vector.multi_reduction <add>, %25, %cst_18 [0] : vector<2x2xf32> to vector<2xf32>
      %27 = vector.shape_cast %26 : vector<2xf32> to vector<1x2xf32>
      %28 = vector.broadcast %18 : vector<2x1xf32> to vector<2x2xf32>
      %29 = vector.broadcast %27 : vector<1x2xf32> to vector<2x2xf32>
      %30 = arith.addf %28, %29 : vector<2x2xf32>
      %cst_19 = arith.constant 2.000000e+00 : f32
      %31 = vector.broadcast %cst_19 : f32 to vector<2x2xf32>
      %32 = arith.mulf %31, %17 : vector<2x2xf32>
      %33 = arith.subf %30, %32 : vector<2x2xf32>
      %cst_20 = arith.constant 1.000000e+00 : f32
      %cst_21 = arith.constant 1.024000e+03 : f32
      %34 = arith.divf %cst_20, %cst_21 : f32
      %35 = vector.broadcast %34 : f32 to vector<2x2xf32>
      %36 = arith.mulf %33, %35 : vector<2x2xf32>
      %c0_22 = arith.constant 0 : index
      %c0_23 = arith.constant 0 : index
      %37 = vector.load %arg1[%c0_22, %c0_23] : memref<2x32xf32, #tpu.memory_space<vmem>>, vector<2x32xf32>
      %38 = arith.mulf %37, %37 : vector<2x32xf32>
      %cst_24 = arith.constant dense<0.000000e+00> : vector<2xf32>
      %39 = vector.multi_reduction <add>, %38, %cst_24 [1] : vector<2x32xf32> to vector<2xf32>
      %40 = vector.shape_cast %39 : vector<2xf32> to vector<2x1xf32>
      %cst_25 = arith.constant dense<0.000000e+00> : vector<2x2xf32>
      %41 = tpu.matmul %37, %37, %cst_25 {dimension_numbers = #tpu.dot_dimension_numbers<[1], [1], [0], [0], [0, 0, 1, 0], [], []>} : vector<2x32xf32>, vector<2x32xf32>, vector<2x2xf32> -> vector<2x2xf32>
      %42 = tpu.iota {dimensions = array<i32: 0>} : vector<2x2xi32>
      %43 = tpu.iota {dimensions = array<i32: 1>} : vector<2x2xi32>
      %44 = vector.shape_cast %40 : vector<2x1xf32> to vector<2x1xf32>
      %45 = vector.broadcast %44 : vector<2x1xf32> to vector<2x2xf32>
      %46 = arith.cmpi eq, %42, %43 : vector<2x2xi32>
      %cst_26 = arith.constant 0.000000e+00 : f32
      %47 = vector.broadcast %cst_26 : f32 to vector<2x2xf32>
      %48 = arith.select %46, %45, %47 : vector<2x2xi1>, vector<2x2xf32>
      %cst_27 = arith.constant dense<0.000000e+00> : vector<2xf32>
      %49 = vector.multi_reduction <add>, %48, %cst_27 [0] : vector<2x2xf32> to vector<2xf32>
      %50 = vector.shape_cast %49 : vector<2xf32> to vector<1x2xf32>
      %51 = vector.broadcast %40 : vector<2x1xf32> to vector<2x2xf32>
      %52 = vector.broadcast %50 : vector<1x2xf32> to vector<2x2xf32>
      %53 = arith.addf %51, %52 : vector<2x2xf32>
      %cst_28 = arith.constant 2.000000e+00 : f32
      %54 = vector.broadcast %cst_28 : f32 to vector<2x2xf32>
      %55 = arith.mulf %54, %41 : vector<2x2xf32>
      %56 = arith.subf %53, %55 : vector<2x2xf32>
      %cst_29 = arith.constant 1.000000e+00 : f32
      %cst_30 = arith.constant 3.200000e+01 : f32
      %57 = arith.divf %cst_29, %cst_30 : f32
      %58 = vector.broadcast %57 : f32 to vector<2x2xf32>
      %59 = arith.mulf %56, %58 : vector<2x2xf32>
      %cst_31 = arith.constant 0.000000e+00 : f32
      %60 = vector.broadcast %cst_31 : f32 to vector<2x2xf32>
      %61 = arith.subf %60, %36 : vector<2x2xf32>
      %62 = arith.mulf %61, %59 : vector<2x2xf32>
      %cst_32 = arith.constant dense<0.000000e+00> : vector<2xf32>
      %63 = vector.multi_reduction <add>, %62, %cst_32 [1] : vector<2x2xf32> to vector<2xf32>
      %64 = vector.shape_cast %63 : vector<2xf32> to vector<2x1xf32>
      %cst_33 = arith.constant dense<0.000000e+00> : vector<1xf32>
      %65 = vector.multi_reduction <add>, %64, %cst_33 [0] : vector<2x1xf32> to vector<1xf32>
      %66 = vector.shape_cast %65 : vector<1xf32> to vector<1x1xf32>
      %cst_34 = arith.constant 1.000000e+00 : f32
      %cst_35 = arith.constant 4.000000e+00 : f32
      %67 = arith.divf %cst_34, %cst_35 : f32
      %68 = vector.broadcast %67 : f32 to vector<1x1xf32>
      %69 = arith.mulf %66, %68 : vector<1x1xf32>
      %70 = math.exp %69 : vector<1x1xf32>
      %c0_36 = arith.constant 0 : index
      %c0_37 = arith.constant 0 : index
      %71 = vector.load %arg3[%c0_36, %c0_37] : memref<1x1xf32, #tpu.memory_space<vmem>>, vector<1x1xf32>
      tpu.vector_store %arg3[%c0_36, %c0_37], %70 {strides = array<i32>} : memref<1x1xf32, #tpu.memory_space<vmem>>, vector<1x1xf32>,
    } else {
    }
    return
  }
  func.func @transform_0(%arg0: i32) -> (i32, i32) {
    %c0_i32 = arith.constant 0 : i32
    %c0_i32_0 = arith.constant 0 : i32
    %c0_i32_1 = arith.constant 0 : i32
    return %c0_i32, %c0_i32_0 : i32, i32
  }
  func.func @transform_1(%arg0: i32) -> (i32, i32) {
    %c0_i32 = arith.constant 0 : i32
    %c0_i32_0 = arith.constant 0 : i32
    return %c0_i32, %arg0 : i32, i32
  }
  func.func @transform_2(%arg0: i32) -> (i32, i32) {
    %c0_i32 = arith.constant 0 : i32
    %c0_i32_0 = arith.constant 0 : i32
    %c0_i32_1 = arith.constant 0 : i32
    return %c0_i32, %c0_i32_0 : i32, i32
  }
}

</mosaic_0001>

<llo_original>
// kernel: tpu_custom_call.1
$region0: #{tpu_custom_call.1}
  #allocation0 [shape = 'u32[]', space=smem, size = 0x4, offset = 0x4, fixed_abs, tag = 'smem constant byte address 0x4 - core index']
  #allocation1 [shape = 'u32[144,128]{1,0:T(1,128)}', space=vmem, size = 0x12000, scoped, tag = 'internal scratch']
  #allocation2 [shape = 'f32[2,2]{1,0:T(2,128)}', space=vmem, size = 0x400, scoped, tag = 'scratch operand']
  #allocation3 [shape = 'f32[2,1]{1,0:T(2,128)}', space=vmem, size = 0x400, scoped, tag = 'scratch operand']
  %s0 = inlined_call_operand.hbm [shape: f32[2,32], index: 0, kind: input, shape index: {}]
  %s1 = inlined_call_operand.hbm [shape: f32[2,1024], index: 1, kind: input, shape index: {}]
  %s2 = inlined_call_operand.hbm [shape: f32[1,1], index: 2, kind: output, shape index: {}]
  %s3 = sld [smem:[#allocation0]]
  $region34: #{tpu_custom_call.1} parent=0
    _
  %s5 = ssub.s32 1, %s3
  %s6 = scalar_select 0, %s5, %s3
  $region1: #{tpu_custom_call.1} parent=0
    #allocation4 [shape = 'u8[1024]{0}', space=vmem, size = 0x400, scoped, tag = 'input window, operand 0, single buffered']
    #allocation5 [shape = 's32[1]{0}', space=sflag, size = 0x4, scoped, tag = 'scoped memory for tpu_custom_call.1']
    #allocation6 [shape = 's32[1]{0}', space=sflag, size = 0x4, scoped, tag = 'scoped memory for tpu_custom_call.1']
    #allocation7 [shape = 'u8[8192]{0}', space=vmem, size = 0x2000, scoped, tag = 'input window, operand 1, single buffered']
    #allocation8 [shape = 's32[1]{0}', space=sflag, size = 0x4, scoped, tag = 'scoped memory for tpu_custom_call.1']
    #allocation9 [shape = 'u8[512]{0}', space=vmem, size = 0x400, scoped, tag = 'output window, operand 0, single buffered']
    %7 = vsyncpa [#allocation5], 0
    %8 = vsyncpa [#allocation8], 0
    %9 = vsyncpa [#allocation6], 0
    // Predicated region
    $region2: #{tpu_custom_call.1} parent=1 // pred_check
      _
    $region3: #{tpu_custom_call.1} parent=1 // pred_check_branch
      %11 = sbr.rel (0) target = $region5
    $region4: #{tpu_custom_call.1} parent=1 // pred_region
      %s13 = ssub.s32 32, 32
      %14 = vsyncadd [#allocation5], %s13
      %s16 = sshll.u32 [#allocation4], 4
      %s17 = int_to_ptr.vmem [resolvable:$true] %s16
      %19 = dma.hbm_to_vmem [thread:$0]  %s0, 32, %s17, [#allocation5]
    $region5: #{tpu_custom_call.1} parent=1 // pred_fallthru
      _
    // Predicated region
    $region6: #{tpu_custom_call.1} parent=1 // pred_check
      _
    $region7: #{tpu_custom_call.1} parent=1 // pred_check_branch
      %21 = sbr.rel (0) target = $region9
    $region8: #{tpu_custom_call.1} parent=1 // pred_region
      %s23 = ssub.s32 256, 256
      %24 = vsyncadd [#allocation8], %s23
      %s26 = sshll.u32 [#allocation7], 4
      %s27 = int_to_ptr.vmem [resolvable:$true] %s26
      %29 = dma.hbm_to_vmem [thread:$0]  %s1, 256, %s27, [#allocation8]
    $region9: #{tpu_custom_call.1} parent=1 // pred_fallthru
      _
    // Predicated region
    $region10: #{tpu_custom_call.1} parent=1 // pred_check
      _
    $region11: #{tpu_custom_call.1} parent=1 // pred_check_branch
      %31 = sbr.rel (0) target = $region13
    $region12: #{tpu_custom_call.1} parent=1 // pred_region
      %32 = dma.done [#allocation5], 32
    $region13: #{tpu_custom_call.1} parent=1 // pred_fallthru
      _
    // Predicated region
    $region14: #{tpu_custom_call.1} parent=1 // pred_check
      _
    $region15: #{tpu_custom_call.1} parent=1 // pred_check_branch
      %34 = sbr.rel (0) target = $region17
    $region16: #{tpu_custom_call.1} parent=1 // pred_region
      %35 = dma.done [#allocation8], 256
    $region17: #{tpu_custom_call.1} parent=1 // pred_fallthru
      _
    %p36 = scmp.eq.s32.totalorder 0, 0
    // Predicated region
    $region18: #{tpu_custom_call.1} parent=1 // pred_check
      %p37 = pneg %p36
    $region19: #{tpu_custom_call.1} parent=1 // pred_check_branch
      %39 = sbr.rel (%p37) target = $region21
    $region20: #{tpu_custom_call.1} parent=1 // pred_region
      %vm40 = vcmask 9216
      %41 = vst.msk [vmem:[#allocation2] sm:$0x3] %vm40, 0.0
      %vm42 = vcmask 1024
      %43 = vst.msk [vmem:[#allocation3] sm:$0x3] %vm42, 0.0
    $region21: #{tpu_custom_call.1} parent=1 // pred_fallthru
      _
    %v44 = vld [vmem:[#allocation7] sm:$0xff]
    %v45 = vld [vmem:[#allocation7 + $0x8] sm:$0xff]
    %v46 = vld [vmem:[#allocation3] sm:$0x3]
    %v47 = vmul.f32 %v44, %v44
    %v48 = vmul.f32 %v45, %v45
    %v51 = vcombine.high %v47, %v47
    %v53 = vunpack.c.l.s4 1983009808
    %v54 = vunpack.c.0.s8 %v53
    %v55 = vlaneseq
    %v56 = vshrl.u32 %v55, 7
    %v57 = vsub.s32 %v54, %v56
    %v58 = vrot.slane %v47, %v57
    %v60 = vunpack.c.l.s4 1983009808
    %v61 = vunpack.c.0.s8 %v60
    %v62 = vlaneseq
    %v63 = vshrl.u32 %v62, 7
    %v64 = vsub.s32 %v61, %v63
    %v65 = vrot.slane %v51, %v64
    %v66 = vcombine.high %v58, %v58
    %v67 = vcombine.high %v65, %v65
    %v68 = vcombine.high %v48, %v48
    %v70 = vunpack.c.l.s4 1983009808
    %v71 = vunpack.c.0.s8 %v70
    %v72 = vlaneseq
    %v73 = vshrl.u32 %v72, 7
    %v74 = vsub.s32 %v71, %v73
    %v75 = vrot.slane %v48, %v74
    %v77 = vunpack.c.l.s4 1983009808
    %v78 = vunpack.c.0.s8 %v77
    %v79 = vlaneseq
    %v80 = vshrl.u32 %v79, 7
    %v81 = vsub.s32 %v78, %v80
    %v82 = vrot.slane %v68, %v81
    %v83 = vcombine.high %v75, %v75
    %v84 = vcombine.high %v82, %v82
    %vm93 = vcmask 1041408
    %v94 = vsel %vm93, %v58, 0.0
    %v95 = vsel %vm93, %v66, 0.0
    %v96 = vadd.f32 %v94, %v95
    %v97 = vsel %vm93, %v65, 0.0
    %v98 = vadd.f32 %v96, %v97
    %v99 = vsel %vm93, %v67, 0.0
    %v100 = vadd.f32 %v98, %v99
    %v101 = vsel %vm93, %v75, 0.0
    %v102 = vadd.f32 %v100, %v101
    %v103 = vsel %vm93, %v83, 0.0
    %v104 = vadd.f32 %v102, %v103
    %v105 = vsel %vm93, %v82, 0.0
    %v106 = vadd.f32 %v104, %v105
    %v107 = vsel %vm93, %v84, 0.0
    %v108 = vadd.f32 %v106, %v107
    %109 = vadd.xlane.f32.xlu0 %v108
    %v110 = vpop.xlane.xlu0 %109
    %v111 = vadd.f32 %v46, %v110
    %vm112 = vcmask 1024
    %113 = vst.msk [vmem:[#allocation3] sm:$0x3] %vm112, %v111
    %v114 = vld [vmem:[#allocation2] sm:$0x3]
    %v117 = vcombine.high %v44, %v44
    %v119 = vunpack.c.l.s4 1983009808
    %v120 = vunpack.c.0.s8 %v119
    %v121 = vlaneseq
    %v122 = vshrl.u32 %v121, 7
    %v123 = vsub.s32 %v120, %v122
    %v124 = vrot.slane %v44, %v123
    %v126 = vunpack.c.l.s4 1983009808
    %v127 = vunpack.c.0.s8 %v126
    %v128 = vlaneseq
    %v129 = vshrl.u32 %v128, 7
    %v130 = vsub.s32 %v127, %v129
    %v131 = vrot.slane %v117, %v130
    %v132 = vcombine.high %v124, %v124
    %v133 = vcombine.high %v131, %v131
    %v134 = vcombine.high %v45, %v45
    %v136 = vunpack.c.l.s4 1983009808
    %v137 = vunpack.c.0.s8 %v136
    %v138 = vlaneseq
    %v139 = vshrl.u32 %v138, 7
    %v140 = vsub.s32 %v137, %v139
    %v141 = vrot.slane %v45, %v140
    %v143 = vunpack.c.l.s4 1983009808
    %v144 = vunpack.c.0.s8 %v143
    %v145 = vlaneseq
    %v146 = vshrl.u32 %v145, 7
    %v147 = vsub.s32 %v144, %v146
    %v148 = vrot.slane %v134, %v147
    %v149 = vcombine.high %v141, %v141
    %v150 = vcombine.high %v148, %v148
    %159 = vmatprep.subr.mxu0 0.0
    %160 = vmatpush1.xpose.msra.mxu0 0.0
    %161 = vmatprep.subr.mxu0 0.0
    %162 = vmatpush1.xpose.msra.mxu0 0.0
    %163 = vmatprep.subr.mxu0 0.0
    %164 = vmatpush1.xpose.msra.mxu0 0.0
    %165 = vmatprep.subr.mxu0 0.0
    %166 = vmatpush1.xpose.msra.mxu0 0.0
    %167 = vmatprep.subr.mxu0 0.0
    %168 = vmatpush1.xpose.msra.mxu0 0.0
    %169 = vmatprep.subr.mxu0 0.0
    %170 = vmatpush1.xpose.msra.mxu0 0.0
    %171 = vmatprep.subr.mxu0 0.0
    %172 = vmatpush1.xpose.msra.mxu0 0.0
    %173 = vmatprep.subr.mxu0 0.0
    %174 = vmatpush1.xpose.msra.mxu0 0.0
    %175 = vmatprep.subr.mxu0 0.0
    %176 = vmatpush1.xpose.msra.mxu0 0.0
    %177 = vmatprep.subr.mxu0 0.0
    %178 = vmatpush1.xpose.msra.mxu0 0.0
    %179 = vmatprep.subr.mxu0 0.0
    %180 = vmatpush1.xpose.msra.mxu0 0.0
    %181 = vmatprep.subr.mxu0 0.0
    %182 = vmatpush1.xpose.msra.mxu0 0.0
    %183 = vmatprep.subr.mxu0 0.0
    %184 = vmatpush1.xpose.msra.mxu0 0.0
    %185 = vmatprep.subr.mxu0 0.0
    %186 = vmatpush1.xpose.msra.mxu0 0.0
    %187 = vmatprep.subr.mxu0 0.0
    %188 = vmatpush1.xpose.msra.mxu0 0.0
    %189 = vmatprep.subr.mxu0 %v132
    %190 = vmatpush1.xpose.msra.mxu0 %v124
    %191 = vmatprep.subr.mxu0 0.0
    %192 = vmatpush2.xpose.msra.mxu0 0.0
    %193 = vmatprep.subr.mxu0 0.0
    %194 = vmatpush2.xpose.msra.mxu0 0.0
    %195 = vmatprep.subr.mxu0 0.0
    %196 = vmatpush2.xpose.msra.mxu0 0.0
    %197 = vmatprep.subr.mxu0 0.0
    %198 = vmatpush2.xpose.msra.mxu0 0.0
    %199 = vmatprep.subr.mxu0 0.0
    %200 = vmatpush2.xpose.msra.mxu0 0.0
    %201 = vmatprep.subr.mxu0 0.0
    %202 = vmatpush2.xpose.msra.mxu0 0.0
    %203 = vmatprep.subr.mxu0 0.0
    %204 = vmatpush2.xpose.msra.mxu0 0.0
    %205 = vmatprep.subr.mxu0 0.0
    %206 = vmatpush2.xpose.msra.mxu0 0.0
    %207 = vmatprep.subr.mxu0 0.0
    %208 = vmatpush2.xpose.msra.mxu0 0.0
    %209 = vmatprep.subr.mxu0 0.0
    %210 = vmatpush2.xpose.msra.mxu0 0.0
    %211 = vmatprep.subr.mxu0 0.0
    %212 = vmatpush2.xpose.msra.mxu0 0.0
    %213 = vmatprep.subr.mxu0 0.0
    %214 = vmatpush2.xpose.msra.mxu0 0.0
    %215 = vmatprep.subr.mxu0 0.0
    %216 = vmatpush2.xpose.msra.mxu0 0.0
    %217 = vmatprep.subr.mxu0 0.0
    %218 = vmatpush2.xpose.msra.mxu0 0.0
    %219 = vmatprep.subr.mxu0 0.0
    %220 = vmatpush2.xpose.msra.mxu0 0.0
    %221 = vmatprep.subr.mxu0 0.0
    %222 = vmatpush2.xpose.msra.mxu0 0.0
    %223 = vmatprep.mubr.f32.mxu0 %v132
    %224 = vmatmul.mubr.f32.gmra.mxu0 %v124
    %v225 = vpop.f32.mrf.mxu0
    %v226 = vadd.f32 0.0, %v225
    %v227 = vpop.f32.mrf.mxu0
    %228 = vdwg.mxu0
    %229 = vmatprep.subr.mxu0 0.0
    %230 = vmatpush1.xpose.msra.mxu0 0.0
    %231 = vmatprep.subr.mxu0 0.0
    %232 = vmatpush1.xpose.msra.mxu0 0.0
    %233 = vmatprep.subr.mxu0 0.0
    %234 = vmatpush1.xpose.msra.mxu0 0.0
    %235 = vmatprep.subr.mxu0 0.0
    %236 = vmatpush1.xpose.msra.mxu0 0.0
    %237 = vmatprep.subr.mxu0 0.0
    %238 = vmatpush1.xpose.msra.mxu0 0.0
    %239 = vmatprep.subr.mxu0 0.0
    %240 = vmatpush1.xpose.msra.mxu0 0.0
    %241 = vmatprep.subr.mxu0 0.0
    %242 = vmatpush1.xpose.msra.mxu0 0.0
    %243 = vmatprep.subr.mxu0 0.0
    %244 = vmatpush1.xpose.msra.mxu0 0.0
    %245 = vmatprep.subr.mxu0 0.0
    %246 = vmatpush1.xpose.msra.mxu0 0.0
    %247 = vmatprep.subr.mxu0 0.0
    %248 = vmatpush1.xpose.msra.mxu0 0.0
    %249 = vmatprep.subr.mxu0 0.0
    %250 = vmatpush1.xpose.msra.mxu0 0.0
    %251 = vmatprep.subr.mxu0 0.0
    %252 = vmatpush1.xpose.msra.mxu0 0.0
    %253 = vmatprep.subr.mxu0 0.0
    %254 = vmatpush1.xpose.msra.mxu0 0.0
    %255 = vmatprep.subr.mxu0 0.0
    %256 = vmatpush1.xpose.msra.mxu0 0.0
    %257 = vmatprep.subr.mxu0 0.0
    %258 = vmatpush1.xpose.msra.mxu0 0.0
    %259 = vmatprep.subr.mxu0 %v133
    %260 = vmatpush1.xpose.msra.mxu0 %v131
    %261 = vmatprep.subr.mxu0 0.0
    %262 = vmatpush2.xpose.msra.mxu0 0.0
    %263 = vmatprep.subr.mxu0 0.0
    %264 = vmatpush2.xpose.msra.mxu0 0.0
    %265 = vmatprep.subr.mxu0 0.0
    %266 = vmatpush2.xpose.msra.mxu0 0.0
    %267 = vmatprep.subr.mxu0 0.0
    %268 = vmatpush2.xpose.msra.mxu0 0.0
    %269 = vmatprep.subr.mxu0 0.0
    %270 = vmatpush2.xpose.msra.mxu0 0.0
    %271 = vmatprep.subr.mxu0 0.0
    %272 = vmatpush2.xpose.msra.mxu0 0.0
    %273 = vmatprep.subr.mxu0 0.0
    %274 = vmatpush2.xpose.msra.mxu0 0.0
    %275 = vmatprep.subr.mxu0 0.0
    %276 = vmatpush2.xpose.msra.mxu0 0.0
    %277 = vmatprep.subr.mxu0 0.0
    %278 = vmatpush2.xpose.msra.mxu0 0.0
    %279 = vmatprep.subr.mxu0 0.0
    %280 = vmatpush2.xpose.msra.mxu0 0.0
    %281 = vmatprep.subr.mxu0 0.0
    %282 = vmatpush2.xpose.msra.mxu0 0.0
    %283 = vmatprep.subr.mxu0 0.0
    %284 = vmatpush2.xpose.msra.mxu0 0.0
    %285 = vmatprep.subr.mxu0 0.0
    %286 = vmatpush2.xpose.msra.mxu0 0.0
    %287 = vmatprep.subr.mxu0 0.0
    %288 = vmatpush2.xpose.msra.mxu0 0.0
    %289 = vmatprep.subr.mxu0 0.0
    %290 = vmatpush2.xpose.msra.mxu0 0.0
    %291 = vmatprep.subr.mxu0 0.0
    %292 = vmatpush2.xpose.msra.mxu0 0.0
    %293 = vmatprep.mubr.f32.mxu0 %v133
    %294 = vmatmul.mubr.f32.gmra.mxu0 %v131
    %v295 = vpop.f32.mrf.mxu0
    %v296 = vadd.f32 %v226, %v295
    %v297 = vpop.f32.mrf.mxu0
    %298 = vdwg.mxu0
    %299 = vmatprep.subr.mxu0 0.0
    %300 = vmatpush1.xpose.msra.mxu0 0.0
    %301 = vmatprep.subr.mxu0 0.0
    %302 = vmatpush1.xpose.msra.mxu0 0.0
    %303 = vmatprep.subr.mxu0 0.0
    %304 = vmatpush1.xpose.msra.mxu0 0.0
    %305 = vmatprep.subr.mxu0 0.0
    %306 = vmatpush1.xpose.msra.mxu0 0.0
    %307 = vmatprep.subr.mxu0 0.0
    %308 = vmatpush1.xpose.msra.mxu0 0.0
    %309 = vmatprep.subr.mxu0 0.0
    %310 = vmatpush1.xpose.msra.mxu0 0.0
    %311 = vmatprep.subr.mxu0 0.0
    %312 = vmatpush1.xpose.msra.mxu0 0.0
    %313 = vmatprep.subr.mxu0 0.0
    %314 = vmatpush1.xpose.msra.mxu0 0.0
    %315 = vmatprep.subr.mxu0 0.0
    %316 = vmatpush1.xpose.msra.mxu0 0.0
    %317 = vmatprep.subr.mxu0 0.0
    %318 = vmatpush1.xpose.msra.mxu0 0.0
    %319 = vmatprep.subr.mxu0 0.0
    %320 = vmatpush1.xpose.msra.mxu0 0.0
    %321 = vmatprep.subr.mxu0 0.0
    %322 = vmatpush1.xpose.msra.mxu0 0.0
    %323 = vmatprep.subr.mxu0 0.0
    %324 = vmatpush1.xpose.msra.mxu0 0.0
    %325 = vmatprep.subr.mxu0 0.0
    %326 = vmatpush1.xpose.msra.mxu0 0.0
    %327 = vmatprep.subr.mxu0 0.0
    %328 = vmatpush1.xpose.msra.mxu0 0.0
    %329 = vmatprep.subr.mxu0 %v149
    %330 = vmatpush1.xpose.msra.mxu0 %v141
    %331 = vmatprep.subr.mxu0 0.0
    %332 = vmatpush2.xpose.msra.mxu0 0.0
    %333 = vmatprep.subr.mxu0 0.0
    %334 = vmatpush2.xpose.msra.mxu0 0.0
    %335 = vmatprep.subr.mxu0 0.0
    %336 = vmatpush2.xpose.msra.mxu0 0.0
    %337 = vmatprep.subr.mxu0 0.0
    %338 = vmatpush2.xpose.msra.mxu0 0.0
    %339 = vmatprep.subr.mxu0 0.0
    %340 = vmatpush2.xpose.msra.mxu0 0.0
    %341 = vmatprep.subr.mxu0 0.0
    %342 = vmatpush2.xpose.msra.mxu0 0.0
    %343 = vmatprep.subr.mxu0 0.0
    %344 = vmatpush2.xpose.msra.mxu0 0.0
    %345 = vmatprep.subr.mxu0 0.0
    %346 = vmatpush2.xpose.msra.mxu0 0.0
    %347 = vmatprep.subr.mxu0 0.0
    %348 = vmatpush2.xpose.msra.mxu0 0.0
    %349 = vmatprep.subr.mxu0 0.0
    %350 = vmatpush2.xpose.msra.mxu0 0.0
    %351 = vmatprep.subr.mxu0 0.0
    %352 = vmatpush2.xpose.msra.mxu0 0.0
    %353 = vmatprep.subr.mxu0 0.0
    %354 = vmatpush2.xpose.msra.mxu0 0.0
    %355 = vmatprep.subr.mxu0 0.0
    %356 = vmatpush2.xpose.msra.mxu0 0.0
    %357 = vmatprep.subr.mxu0 0.0
    %358 = vmatpush2.xpose.msra.mxu0 0.0
    %359 = vmatprep.subr.mxu0 0.0
    %360 = vmatpush2.xpose.msra.mxu0 0.0
    %361 = vmatprep.subr.mxu0 0.0
    %362 = vmatpush2.xpose.msra.mxu0 0.0
    %363 = vmatprep.mubr.f32.mxu0 %v149
    %364 = vmatmul.mubr.f32.gmra.mxu0 %v141
    %v365 = vpop.f32.mrf.mxu0
    %v366 = vadd.f32 %v296, %v365
    %v367 = vpop.f32.mrf.mxu0
    %368 = vdwg.mxu0
    %369 = vmatprep.subr.mxu0 0.0
    %370 = vmatpush1.xpose.msra.mxu0 0.0
    %371 = vmatprep.subr.mxu0 0.0
    %372 = vmatpush1.xpose.msra.mxu0 0.0
    %373 = vmatprep.subr.mxu0 0.0
    %374 = vmatpush1.xpose.msra.mxu0 0.0
    %375 = vmatprep.subr.mxu0 0.0
    %376 = vmatpush1.xpose.msra.mxu0 0.0
    %377 = vmatprep.subr.mxu0 0.0
    %378 = vmatpush1.xpose.msra.mxu0 0.0
    %379 = vmatprep.subr.mxu0 0.0
    %380 = vmatpush1.xpose.msra.mxu0 0.0
    %381 = vmatprep.subr.mxu0 0.0
    %382 = vmatpush1.xpose.msra.mxu0 0.0
    %383 = vmatprep.subr.mxu0 0.0
    %384 = vmatpush1.xpose.msra.mxu0 0.0
    %385 = vmatprep.subr.mxu0 0.0
    %386 = vmatpush1.xpose.msra.mxu0 0.0
    %387 = vmatprep.subr.mxu0 0.0
    %388 = vmatpush1.xpose.msra.mxu0 0.0
    %389 = vmatprep.subr.mxu0 0.0
    %390 = vmatpush1.xpose.msra.mxu0 0.0
    %391 = vmatprep.subr.mxu0 0.0
    %392 = vmatpush1.xpose.msra.mxu0 0.0
    %393 = vmatprep.subr.mxu0 0.0
    %394 = vmatpush1.xpose.msra.mxu0 0.0
    %395 = vmatprep.subr.mxu0 0.0
    %396 = vmatpush1.xpose.msra.mxu0 0.0
    %397 = vmatprep.subr.mxu0 0.0
    %398 = vmatpush1.xpose.msra.mxu0 0.0
    %399 = vmatprep.subr.mxu0 %v150
    %400 = vmatpush1.xpose.msra.mxu0 %v148
    %401 = vmatprep.subr.mxu0 0.0
    %402 = vmatpush2.xpose.msra.mxu0 0.0
    %403 = vmatprep.subr.mxu0 0.0
    %404 = vmatpush2.xpose.msra.mxu0 0.0
    %405 = vmatprep.subr.mxu0 0.0
    %406 = vmatpush2.xpose.msra.mxu0 0.0
    %407 = vmatprep.subr.mxu0 0.0
    %408 = vmatpush2.xpose.msra.mxu0 0.0
    %409 = vmatprep.subr.mxu0 0.0
    %410 = vmatpush2.xpose.msra.mxu0 0.0
    %411 = vmatprep.subr.mxu0 0.0
    %412 = vmatpush2.xpose.msra.mxu0 0.0
    %413 = vmatprep.subr.mxu0 0.0
    %414 = vmatpush2.xpose.msra.mxu0 0.0
    %415 = vmatprep.subr.mxu0 0.0
    %416 = vmatpush2.xpose.msra.mxu0 0.0
    %417 = vmatprep.subr.mxu0 0.0
    %418 = vmatpush2.xpose.msra.mxu0 0.0
    %419 = vmatprep.subr.mxu0 0.0
    %420 = vmatpush2.xpose.msra.mxu0 0.0
    %421 = vmatprep.subr.mxu0 0.0
    %422 = vmatpush2.xpose.msra.mxu0 0.0
    %423 = vmatprep.subr.mxu0 0.0
    %424 = vmatpush2.xpose.msra.mxu0 0.0
    %425 = vmatprep.subr.mxu0 0.0
    %426 = vmatpush2.xpose.msra.mxu0 0.0
    %427 = vmatprep.subr.mxu0 0.0
    %428 = vmatpush2.xpose.msra.mxu0 0.0
    %429 = vmatprep.subr.mxu0 0.0
    %430 = vmatpush2.xpose.msra.mxu0 0.0
    %431 = vmatprep.subr.mxu0 0.0
    %432 = vmatpush2.xpose.msra.mxu0 0.0
    %433 = vmatprep.mubr.f32.mxu0 %v150
    %434 = vmatmul.mubr.f32.gmra.mxu0 %v148
    %v435 = vpop.f32.mrf.mxu0
    %v436 = vadd.f32 %v366, %v435
    %v437 = vpop.f32.mrf.mxu0
    %438 = vdwg.mxu0
    %v439 = vadd.f32 %v114, %v436
    %vm440 = vcmask 9216
    %441 = vst.msk [vmem:[#allocation2] sm:$0x3] %vm440, %v439
    // Predicated region
    $region22: #{tpu_custom_call.1} parent=1 // pred_check
      %p442 = pneg %p36
    $region23: #{tpu_custom_call.1} parent=1 // pred_check_branch
      %444 = sbr.rel (%p442) target = $region25
    $region24: #{tpu_custom_call.1} parent=1 // pred_region
      %v445 = vld [vmem:[#allocation2] sm:$0x3]
      %v446 = vld [vmem:[#allocation3] sm:$0x3]
      %v447 = vlaneseq
      %v448 = vshrl.u32 %v447, 7
      %v449 = vlaneseq
      %v450 = vand.u32 %v449, 127
      %452 = vset.pattern.permute.xlu0 0
      %453 = vperm.xlu0 %452, %v446
      %v454 = vpop.permute.xlu0 %453
      %vm456 = vcmp.eq.s32.totalorder %v448, %v450
      %v457 = vsel %vm456, %v454, 0.0
      %v458 = vsel %vm440, %v457, 0.0
      %v459 = vrot.slane %v458, 4
      %v460 = vadd.f32 %v458, %v459
      %v461 = vrot.slane %v460, 2
      %v462 = vadd.f32 %v460, %v461
      %v463 = vrot.slane %v462, 1
      %v464 = vadd.f32 %v462, %v463
      %v465 = vadd.f32 %v454, %v464
      %v466 = vmul.f32 %v445, 2.0
      %v467 = vsub.f32 %v465, %v466
      %v468 = vmul.f32 %v467, 0.0009765625
      %v469 = vld [vmem:[#allocation4] sm:$0x3]
      %v470 = vmul.f32 %v469, %v469
      %vm471 = vcmask 254976
      %v472 = vsel %vm471, %v470, 0.0
      %473 = vadd.xlane.f32.xlu0 %v472
      %v474 = vpop.xlane.xlu0 %473
      %vm475 = vcmask 261120
      %v477 = vsel %vm475, %v469, 0
      %479 = vmatprep.subr.mxu0 0.0
      %480 = vmatpush1.xpose.msra.mxu0 0.0
      %481 = vmatprep.subr.mxu0 0.0
      %482 = vmatpush1.xpose.msra.mxu0 0.0
      %483 = vmatprep.subr.mxu0 0.0
      %484 = vmatpush1.xpose.msra.mxu0 0.0
      %485 = vmatprep.subr.mxu0 0.0
      %486 = vmatpush1.xpose.msra.mxu0 0.0
      %487 = vmatprep.subr.mxu0 0.0
      %488 = vmatpush1.xpose.msra.mxu0 0.0
      %489 = vmatprep.subr.mxu0 0.0
      %490 = vmatpush1.xpose.msra.mxu0 0.0
      %491 = vmatprep.subr.mxu0 0.0
      %492 = vmatpush1.xpose.msra.mxu0 0.0
      %493 = vmatprep.subr.mxu0 0.0
      %494 = vmatpush1.xpose.msra.mxu0 0.0
      %495 = vmatprep.subr.mxu0 0.0
      %496 = vmatpush1.xpose.msra.mxu0 0.0
      %497 = vmatprep.subr.mxu0 0.0
      %498 = vmatpush1.xpose.msra.mxu0 0.0
      %499 = vmatprep.subr.mxu0 0.0
      %500 = vmatpush1.xpose.msra.mxu0 0.0
      %501 = vmatprep.subr.mxu0 0.0
      %502 = vmatpush1.xpose.msra.mxu0 0.0
      %503 = vmatprep.subr.mxu0 0.0
      %504 = vmatpush1.xpose.msra.mxu0 0.0
      %505 = vmatprep.subr.mxu0 0.0
      %506 = vmatpush1.xpose.msra.mxu0 0.0
      %507 = vmatprep.subr.mxu0 0.0
      %508 = vmatpush1.xpose.msra.mxu0 0.0
      %509 = vmatprep.subr.mxu0 0.0
      %510 = vmatpush1.xpose.msra.mxu0 %v477
      %511 = vmatprep.subr.mxu0 0.0
      %512 = vmatpush2.xpose.msra.mxu0 0.0
      %513 = vmatprep.subr.mxu0 0.0
      %514 = vmatpush2.xpose.msra.mxu0 0.0
      %515 = vmatprep.subr.mxu0 0.0
      %516 = vmatpush2.xpose.msra.mxu0 0.0
      %517 = vmatprep.subr.mxu0 0.0
      %518 = vmatpush2.xpose.msra.mxu0 0.0
      %519 = vmatprep.subr.mxu0 0.0
      %520 = vmatpush2.xpose.msra.mxu0 0.0
      %521 = vmatprep.subr.mxu0 0.0
      %522 = vmatpush2.xpose.msra.mxu0 0.0
      %523 = vmatprep.subr.mxu0 0.0
      %524 = vmatpush2.xpose.msra.mxu0 0.0
      %525 = vmatprep.subr.mxu0 0.0
      %526 = vmatpush2.xpose.msra.mxu0 0.0
      %527 = vmatprep.subr.mxu0 0.0
      %528 = vmatpush2.xpose.msra.mxu0 0.0
      %529 = vmatprep.subr.mxu0 0.0
      %530 = vmatpush2.xpose.msra.mxu0 0.0
      %531 = vmatprep.subr.mxu0 0.0
      %532 = vmatpush2.xpose.msra.mxu0 0.0
      %533 = vmatprep.subr.mxu0 0.0
      %534 = vmatpush2.xpose.msra.mxu0 0.0
      %535 = vmatprep.subr.mxu0 0.0
      %536 = vmatpush2.xpose.msra.mxu0 0.0
      %537 = vmatprep.subr.mxu0 0.0
      %538 = vmatpush2.xpose.msra.mxu0 0.0
      %539 = vmatprep.subr.mxu0 0.0
      %540 = vmatpush2.xpose.msra.mxu0 0.0
      %541 = vmatprep.subr.mxu0 0.0
      %542 = vmatpush2.xpose.msra.mxu0 0.0
      %543 = vmatprep.mubr.f32.mxu0 0.0
      %544 = vmatmul.mubr.f32.gmra.mxu0 %v477
      %v545 = vpop.f32.mrf.mxu0
      %v546 = vadd.f32 0.0, %v545
      %v547 = vpop.f32.mrf.mxu0
      %548 = vdwg.mxu0
      %v549 = vsel %vm456, %v474, 0.0
      %v550 = vsel %vm440, %v549, 0.0
      %v551 = vrot.slane %v550, 4
      %v552 = vadd.f32 %v550, %v551
      %v553 = vrot.slane %v552, 2
      %v554 = vadd.f32 %v552, %v553
      %v555 = vrot.slane %v554, 1
      %v556 = vadd.f32 %v554, %v555
      %v557 = vadd.f32 %v474, %v556
      %v558 = vmul.f32 %v546, 2.0
      %v559 = vsub.f32 %v557, %v558
      %v560 = vmul.f32 %v559, 0.03125
      %v561 = vsub.f32 0.0, %v468
      %v562 = vmul.f32 %v561, %v560
      %v563 = vsel %vm440, %v562, 0.0
      %564 = vadd.xlane.f32.xlu0 %v563
      %v565 = vpop.xlane.xlu0 %564
      %v566 = vsel %vm93, %v565, 0.0
      %v567 = vrot.slane %v566, 4
      %v568 = vadd.f32 %v566, %v567
      %v569 = vrot.slane %v568, 2
      %v570 = vadd.f32 %v568, %v569
      %v571 = vrot.slane %v570, 1
      %v572 = vadd.f32 %v570, %v571
      %v573 = vmul.f32 %v572, 0.25
      %v574 = vmul.f32 %v573, 1.442695
      %v575 = vpow.pop %v574
      %vm576 = vcmask 0
      %577 = vst.msk [vmem:[#allocation9] sm:$0x1] %vm576, %v575
    $region25: #{tpu_custom_call.1} parent=1 // pred_fallthru
      _
    // Predicated region
    $region26: #{tpu_custom_call.1} parent=1 // pred_check
      _
    $region27: #{tpu_custom_call.1} parent=1 // pred_check_branch
      %579 = sbr.rel (0) target = $region29
    $region28: #{tpu_custom_call.1} parent=1 // pred_region
      %s581 = ssub.s32 16, 16
      %582 = vsyncadd [#allocation6], %s581
      %s584 = sshll.u32 [#allocation9], 4
      %s585 = int_to_ptr.vmem [resolvable:$true] %s584
      %587 = dma.vmem_to_hbm [thread:$0]  %s585, 16, %s2, [#allocation6]
    $region29: #{tpu_custom_call.1} parent=1 // pred_fallthru
      _
    // Predicated region
    $region30: #{tpu_custom_call.1} parent=1 // pred_check
      _
    $region31: #{tpu_custom_call.1} parent=1 // pred_check_branch
      %589 = sbr.rel (0) target = $region33
    $region32: #{tpu_custom_call.1} parent=1 // pred_region
      %590 = dma.done [#allocation6], 16
    $region33: #{tpu_custom_call.1} parent=1 // pred_fallthru
      _
    %591 = vsyncpa [#allocation5], 1
    %592 = vsyncpa [#allocation8], 1
    %593 = vsyncpa [#allocation6], 1

</llo_original>
